<compile_context>
chip_gen: v5e
topology: v5e:2x2
jax: 0.10.0
libtpu: 0.0.40
codegen_flags: <defaults>
</compile_context>

<pallas_src>
import math
import numpy as np
import jax
import jax.numpy as jnp
from jax.experimental import pallas as pl
from jax.experimental.pallas import tpu as pltpu


# ----------------------------------------------------------------------------
# Host-side (one-time) B-spline basis construction (Cox-de Boor recursion),
# matching scipy.interpolate.splev used by the reference `bs` function.
# ----------------------------------------------------------------------------
def _bspline_basis(x, knots, degree):
    x = np.asarray(x, dtype=np.float64)
    knots = np.asarray(knots, dtype=np.float64)
    n_basis = len(knots) - degree - 1
    B = np.zeros((len(x), len(knots) - 1), dtype=np.float64)
    last_nonempty = None
    for i in range(len(knots) - 1):
        if knots[i] < knots[i + 1]:
            B[:, i] = ((x >= knots[i]) & (x < knots[i + 1])).astype(np.float64)
            last_nonempty = i
    if last_nonempty is not None:
        B[x == knots[-1], last_nonempty] = 1.0  # include right endpoint
    for d in range(1, degree + 1):
        B_new = np.zeros((len(x), len(knots) - 1 - d), dtype=np.float64)
        for i in range(len(knots) - 1 - d):
            denom1 = knots[i + d] - knots[i]
            denom2 = knots[i + d + 1] - knots[i + 1]
            term = np.zeros(len(x), dtype=np.float64)
            if denom1 > 0:
                term += (x - knots[i]) / denom1 * B[:, i]
            if denom2 > 0:
                term += (knots[i + d + 1] - x) / denom2 * B[:, i + 1]
            B_new[:, i] = term
        B = B_new
    return B[:, :n_basis]


def bs(x, df=None, knots=None, degree=3, intercept=False):
    order = degree + 1
    inner_knots = []
    if df is not None and knots is None:
        n_inner_knots = df - order + (1 - intercept)
        if n_inner_knots < 0:
            n_inner_knots = 0
        if n_inner_knots > 0:
            inner_knots = np.percentile(
                x, 100 * np.linspace(0, 1, n_inner_knots + 2)[1:-1])
    elif knots is not None:
        inner_knots = knots
    all_knots = np.concatenate(([np.min(x), np.max(x)] * order, inner_knots))
    all_knots.sort()
    basis = _bspline_basis(np.asarray(x, dtype=np.float64), all_knots, degree)
    if not intercept:
        basis = basis[:, 1:]
    return basis


def spline_factory(n, df, log=False):
    if log:
        dist = np.array(np.arange(n) - n / 2.0)
        dist = np.log(np.abs(dist) + 1) * (2 * (dist > 0) - 1)
        n_knots = df - 4
        knots = np.linspace(np.min(dist), np.max(dist), n_knots + 2)[1:-1]
        return bs(dist, knots=knots, intercept=True).astype(np.float32)
    else:
        dist = np.arange(n)
        return bs(dist, df=df, intercept=True).astype(np.float32)


# ----------------------------------------------------------------------------
# Pallas kernel: one (tm, K) @ (K, N) MXU matmul per grid step, lane-dense.
# ----------------------------------------------------------------------------
def _bspline_matmul_kernel(x_ref, s_ref, o_ref):
    o_ref[...] = jnp.dot(
        x_ref[...], s_ref[...], preferred_element_type=jnp.float32
    ).astype(o_ref.dtype)


def _round_up(a, b):
    return ((a + b - 1) // b) * b


def _choose_group(n, df, cap=1024):
    """Smallest g such that g*df is a multiple of 128 (lane-dense output),
    bounded so K=g*n and N=g*df stay VMEM-friendly.  (If n is huge the
    fallback reverts to masked stores — a perf cliff, not a wrong answer.)"""
    if df % 128 == 0:
        return 1
    g = 128 // math.gcd(df, 128)
    while g > 1 and (g * n > cap or g * df > cap):
        g //= 2
    return max(g, 1)


def _choose_tm(Mg, tm_max=4096, min_tiles=8, tm_min=1024):
    """Row-tile (in packed rows): as large as tm_max to amortize per-step
    overhead, but shrunk (floor tm_min) so bigger problems still produce
    several grid steps for v7x's two TensorCores."""
    tm = min(tm_max, _round_up(Mg, 8))
    if pl.cdiv(Mg, tm) < min_tiles:
        tm_balanced = max(_round_up(pl.cdiv(Mg, min_tiles), 8), tm_min)
        tm = min(tm, tm_balanced)
    if tm >= Mg:
        # Single tile spanning the full (possibly non-multiple-of-8) row dim:
        # legal because the block dim equals the full array dim.
        return Mg
    return max(tm, 8)


@jax.jit
def bspline_transform(x, s_blk):
    """x: (..., n) float32, s_blk: (g*n, g*df) block-diag spline -> (..., df)."""
    orig_shape = x.shape
    n = orig_shape[-1]
    K, N = s_blk.shape
    g = K // n
    df = N // g

    M = int(np.prod(orig_shape[:-1])) if len(orig_shape) > 1 else 1
    Mg = pl.cdiv(M, g)          # packed rows
    M_pad = Mg * g              # pad only to a multiple of g (< g extra rows)

    x2 = x.reshape(M, n)
    if M_pad != M:
        x2 = jnp.pad(x2, ((0, M_pad - M), (0, 0)))
    x_packed = x2.reshape(Mg, K)

    tm = _choose_tm(Mg)
    grid = (pl.cdiv(Mg, tm),)   # ragged last tile handled by Pallas

    cost = pl.CostEstimate(
        flops=2 * M * n * df,   # true FLOPs, not kron-inflated
        transcendentals=0,
        bytes_accessed=4 * (Mg * K + K * N + Mg * N),
    )

    out = pl.pallas_call(
        _bspline_matmul_kernel,
        out_shape=jax.ShapeDtypeStruct((Mg, N), x.dtype),
        grid_spec=pltpu.PrefetchScalarGridSpec(
            num_scalar_prefetch=0,
            grid=grid,
            in_specs=[
                pl.BlockSpec((tm, K), lambda i: (i, 0)),   # row tile of packed x
                pl.BlockSpec((K, N), lambda i: (0, 0)),    # block-diag spline (resident)
            ],
            out_specs=pl.BlockSpec((tm, N), lambda i: (i, 0)),
        ),
        compiler_params=pltpu.CompilerParams(
            dimension_semantics=("parallel",),
            vmem_limit_bytes=32 * 1024 * 1024,  # large tiles fit v5e's small scoped default
        ),
        cost_estimate=cost,
    )(x_packed, s_blk)

    out = out.reshape(M_pad, df)[:M]
    return out.reshape(orig_shape[:-1] + (df,))


class BSplineTransformation:
    """JAX/Pallas port of the PyTorch BSplineTransformation module."""

    def __init__(self, bins, log=False, scaled=False):
        self._spline_tr = None
        self._s_blk = None
        self._log = log
        self._scaled = scaled
        self._df = bins

    def __call__(self, x):
        if self._spline_tr is None:
            spatial_dim = x.shape[-1]
            s = np.asarray(spline_factory(spatial_dim, self._df, log=self._log),
                           dtype=np.float32)
            if self._scaled:
                s = s / spatial_dim
            self._spline_tr = jnp.asarray(s, dtype=jnp.float32)
            g = _choose_group(spatial_dim, self._df)
            # Block-diagonal kron(I_g, S): built once on host, cached.
            s_blk = np.kron(np.eye(g, dtype=np.float32), s) if g > 1 else s
            self._s_blk = jnp.asarray(s_blk, dtype=jnp.float32)
        return bspline_transform(x, self._s_blk)


if __name__ == "__main__":
    # Small deterministic example: NCHW input (B=2, C=4, H=16, W=16), bins=8.
    key = jax.random.PRNGKey(0)
    x = jax.random.normal(key, (2, 4, 16, 16), dtype=jnp.float32)

    module = BSplineTransformation(bins=8, log=False, scaled=False)
    out = jax.block_until_ready(module(x))

    ref = jnp.matmul(x, module._spline_tr)
    assert out.shape == (2, 4, 16, 8), out.shape
    assert jnp.allclose(out, ref, atol=1e-4, rtol=1e-4), "mismatch vs reference"

    # Exercises the pad-to-multiple-of-g path (M = 136 not a multiple of g=16).
    x2 = jax.random.normal(jax.random.PRNGKey(1), (2, 4, 17, 16), dtype=jnp.float32)
    out2 = jax.block_until_ready(module(x2))
    ref2 = jnp.matmul(x2, module._spline_tr)
    assert out2.shape == (2, 4, 17, 8), out2.shape
    assert jnp.allclose(out2, ref2, atol=1e-4, rtol=1e-4), "mismatch (pad path)"

    # Exercises multi-tile grid + ragged last row tile (Mg=1100 > tm=1024).
    x3 = jax.random.normal(jax.random.PRNGKey(2), (2, 8800, 16), dtype=jnp.float32)
    out3 = jax.block_until_ready(module(x3))
    ref3 = jnp.matmul(x3, module._spline_tr)
    assert out3.shape == (2, 8800, 8), out3.shape
    assert jnp.allclose(out3, ref3, atol=1e-4, rtol=1e-4), "mismatch (ragged tile)"

    print("KERNEL_OK")
</pallas_src>

<mosaic_0001>
module attributes {stable_mosaic.version = 11 : i64} {
  func.func @_bspline_matmul_kernel(%arg0: i32, %arg1: memref<8x256xf32, #tpu.memory_space<vmem>>, %arg2: memref<256x128xf32, #tpu.memory_space<vmem>>, %arg3: memref<8x128xf32, #tpu.memory_space<vmem>>) attributes {dimension_semantics = [#tpu.dimension_semantics<parallel>], iteration_bounds = array<i64: 1>, scalar_prefetch = 0 : i64, scratch_operands = 0 : i64, tpu.core_type = #tpu.core_type<tc>, window_params = [{transform_indices = @transform_0, window_bounds = array<i64: 8, 256>}, {pipeline_mode = #tpu.pipeline_mode<synchronous>, transform_indices = @transform_1, window_bounds = array<i64: 256, 128>}, {transform_indices = @transform_2, window_bounds = array<i64: 8, 128>}]} {
    %c0 = arith.constant 0 : index
    %c0_0 = arith.constant 0 : index
    %0 = vector.load %arg1[%c0, %c0_0] : memref<8x256xf32, #tpu.memory_space<vmem>>, vector<8x256xf32>
    %c0_1 = arith.constant 0 : index
    %c0_2 = arith.constant 0 : index
    %1 = vector.load %arg2[%c0_1, %c0_2] : memref<256x128xf32, #tpu.memory_space<vmem>>, vector<256x128xf32>
    %cst = arith.constant dense<0.000000e+00> : vector<8x128xf32>
    %2 = tpu.matmul %0, %1, %cst {dimension_numbers = #tpu.dot_dimension_numbers<[1], [0], [0], [1], [0, 0, 1, 1], [], []>} : vector<8x256xf32>, vector<256x128xf32>, vector<8x128xf32> -> vector<8x128xf32>
    %c0_3 = arith.constant 0 : index
    %c0_4 = arith.constant 0 : index
    %3 = vector.load %arg3[%c0_3, %c0_4] : memref<8x128xf32, #tpu.memory_space<vmem>>, vector<8x128xf32>
    tpu.vector_store %arg3[%c0_3, %c0_4], %2 {strides = array<i32>} : memref<8x128xf32, #tpu.memory_space<vmem>>, vector<8x128xf32>,
    return
  }
  func.func @transform_0(%arg0: i32) -> (i32, i32) {
    %c0_i32 = arith.constant 0 : i32
    %c0_i32_0 = arith.constant 0 : i32
    return %arg0, %c0_i32 : i32, i32
  }
  func.func @transform_1(%arg0: i32) -> (i32, i32) {
    %c0_i32 = arith.constant 0 : i32
    %c0_i32_0 = arith.constant 0 : i32
    %c0_i32_1 = arith.constant 0 : i32
    return %c0_i32, %c0_i32_0 : i32, i32
  }
  func.func @transform_2(%arg0: i32) -> (i32, i32) {
    %c0_i32 = arith.constant 0 : i32
    %c0_i32_0 = arith.constant 0 : i32
    return %arg0, %c0_i32 : i32, i32
  }
}

</mosaic_0001>

<llo_original>
// kernel: bspline_transform.1
$region0: #{bspline_transform.1}
  #allocation0 [shape = 'u32[]', space=smem, size = 0x4, offset = 0x4, fixed_abs, tag = 'smem constant byte address 0x4 - core index']
  #allocation1 [shape = 'u32[72,128]{1,0:T(1,128)}', space=vmem, size = 0x9000, scoped, tag = 'internal scratch']
  %s0 = inlined_call_operand.vmem [shape: f32[8,256], index: 0, kind: input, shape index: {}]
  %s1 = inlined_call_operand.hbm [shape: f32[256,128], index: 1, kind: input, shape index: {}]
  %s2 = inlined_call_operand.vmem [shape: f32[8,128], index: 2, kind: output, shape index: {}]
  %s3 = sld [smem:[#allocation0]]
  $region22: #{bspline_transform.1} parent=0
    _
  %s5 = ssub.s32 1, %s3
  %s6 = scalar_select 0, %s5, %s3
  $region1: #{bspline_transform.1} parent=0
    #allocation2 [shape = 'u8[131072]{0}', space=vmem, size = 0x20000, scoped, tag = 'input window, operand 1, single buffered']
    #allocation3 [shape = 's32[1]{0}', space=sflag, size = 0x4, scoped, tag = 'scoped memory for bspline_transform.1']
    %7 = vsyncpa [#allocation3], 0
    // Predicated region
    $region2: #{bspline_transform.1} parent=1 // pred_check
      _
    $region3: #{bspline_transform.1} parent=1 // pred_check_branch
      %9 = sbr.rel (0) target = $region5
    $region4: #{bspline_transform.1} parent=1 // pred_region
      _
    $region5: #{bspline_transform.1} parent=1 // pred_fallthru
      _
    // Predicated region
    $region6: #{bspline_transform.1} parent=1 // pred_check
      _
    $region7: #{bspline_transform.1} parent=1 // pred_check_branch
      %11 = sbr.rel (0) target = $region9
    $region8: #{bspline_transform.1} parent=1 // pred_region
      %13 = vsyncadd [#allocation3], 0
      %s14 = sshll.u32 %s1, 4
      %s15 = int_to_ptr.hbm [resolvable:$true] %s14
      %s16 = sshll.u32 [#allocation2], 4
      %s17 = int_to_ptr.vmem [resolvable:$true] %s16
      %22 = dma.hbm_to_vmem [thread:$0]  %s15, 4096, %s17, [#allocation3], 128, 128, 8
    $region9: #{bspline_transform.1} parent=1 // pred_fallthru
      _
    // Predicated region
    $region10: #{bspline_transform.1} parent=1 // pred_check
      _
    $region11: #{bspline_transform.1} parent=1 // pred_check_branch
      %24 = sbr.rel (0) target = $region13
    $region12: #{bspline_transform.1} parent=1 // pred_region
      %26 = dma.done [#allocation3], 4096
    $region13: #{bspline_transform.1} parent=1 // pred_fallthru
      _
    %v27 = vld [vmem:[%s0] sm:$0xff]
    %v28 = vld [vmem:[%s0 + $0x8] sm:$0xff]
    %v29 = vld [vmem:[#allocation2] sm:$0xff]
    %v30 = vld [vmem:[#allocation2 + $0x8] sm:$0xff]
    %v31 = vld [vmem:[#allocation2 + $0x10] sm:$0xff]
    %v32 = vld [vmem:[#allocation2 + $0x18] sm:$0xff]
    %v33 = vld [vmem:[#allocation2 + $0x20] sm:$0xff]
    %v34 = vld [vmem:[#allocation2 + $0x28] sm:$0xff]
    %v35 = vld [vmem:[#allocation2 + $0x30] sm:$0xff]
    %v36 = vld [vmem:[#allocation2 + $0x38] sm:$0xff]
    %v37 = vld [vmem:[#allocation2 + $0x40] sm:$0xff]
    %v38 = vld [vmem:[#allocation2 + $0x48] sm:$0xff]
    %v39 = vld [vmem:[#allocation2 + $0x50] sm:$0xff]
    %v40 = vld [vmem:[#allocation2 + $0x58] sm:$0xff]
    %v41 = vld [vmem:[#allocation2 + $0x60] sm:$0xff]
    %v42 = vld [vmem:[#allocation2 + $0x68] sm:$0xff]
    %v43 = vld [vmem:[#allocation2 + $0x70] sm:$0xff]
    %v44 = vld [vmem:[#allocation2 + $0x78] sm:$0xff]
    %v45 = vld [vmem:[#allocation2 + $0x80] sm:$0xff]
    %v46 = vld [vmem:[#allocation2 + $0x88] sm:$0xff]
    %v47 = vld [vmem:[#allocation2 + $0x90] sm:$0xff]
    %v48 = vld [vmem:[#allocation2 + $0x98] sm:$0xff]
    %v49 = vld [vmem:[#allocation2 + $0xa0] sm:$0xff]
    %v50 = vld [vmem:[#allocation2 + $0xa8] sm:$0xff]
    %v51 = vld [vmem:[#allocation2 + $0xb0] sm:$0xff]
    %v52 = vld [vmem:[#allocation2 + $0xb8] sm:$0xff]
    %v53 = vld [vmem:[#allocation2 + $0xc0] sm:$0xff]
    %v54 = vld [vmem:[#allocation2 + $0xc8] sm:$0xff]
    %v55 = vld [vmem:[#allocation2 + $0xd0] sm:$0xff]
    %v56 = vld [vmem:[#allocation2 + $0xd8] sm:$0xff]
    %v57 = vld [vmem:[#allocation2 + $0xe0] sm:$0xff]
    %v58 = vld [vmem:[#allocation2 + $0xe8] sm:$0xff]
    %v59 = vld [vmem:[#allocation2 + $0xf0] sm:$0xff]
    %v60 = vld [vmem:[#allocation2 + $0xf8] sm:$0xff]
    %61 = vmatpush.msra.mxu0 %v44
    %62 = vmatpush.msra.mxu0 %v43
    %63 = vmatpush.msra.mxu0 %v42
    %64 = vmatpush.msra.mxu0 %v41
    %65 = vmatpush.msra.mxu0 %v40
    %66 = vmatpush.msra.mxu0 %v39
    %67 = vmatpush.msra.mxu0 %v38
    %68 = vmatpush.msra.mxu0 %v37
    %69 = vmatpush.msra.mxu0 %v36
    %70 = vmatpush.msra.mxu0 %v35
    %71 = vmatpush.msra.mxu0 %v34
    %72 = vmatpush.msra.mxu0 %v33
    %73 = vmatpush.msra.mxu0 %v32
    %74 = vmatpush.msra.mxu0 %v31
    %75 = vmatpush.msra.mxu0 %v30
    %76 = vmatpush.msra.mxu0 %v29
    %77 = vmatmul.f32.gmra.mxu0 %v27
    %v78 = vpop.f32.mrf.mxu0
    %v79 = vadd.f32 0.0, %v78
    %80 = vdwg.mxu0
    %81 = vmatpush.msra.mxu0 %v60
    %82 = vmatpush.msra.mxu0 %v59
    %83 = vmatpush.msra.mxu0 %v58
    %84 = vmatpush.msra.mxu0 %v57
    %85 = vmatpush.msra.mxu0 %v56
    %86 = vmatpush.msra.mxu0 %v55
    %87 = vmatpush.msra.mxu0 %v54
    %88 = vmatpush.msra.mxu0 %v53
    %89 = vmatpush.msra.mxu0 %v52
    %90 = vmatpush.msra.mxu0 %v51
    %91 = vmatpush.msra.mxu0 %v50
    %92 = vmatpush.msra.mxu0 %v49
    %93 = vmatpush.msra.mxu0 %v48
    %94 = vmatpush.msra.mxu0 %v47
    %95 = vmatpush.msra.mxu0 %v46
    %96 = vmatpush.msra.mxu0 %v45
    %97 = vmatmul.f32.gmra.mxu0 %v28
    %v98 = vpop.f32.mrf.mxu0
    %v99 = vadd.f32 %v79, %v98
    %100 = vdwg.mxu0
    %101 = vst [vmem:[%s2] sm:$0xff] %v99
    // Predicated region
    $region14: #{bspline_transform.1} parent=1 // pred_check
      _
    $region15: #{bspline_transform.1} parent=1 // pred_check_branch
      %103 = sbr.rel (0) target = $region17
    $region16: #{bspline_transform.1} parent=1 // pred_region
      _
    $region17: #{bspline_transform.1} parent=1 // pred_fallthru
      _
    // Predicated region
    $region18: #{bspline_transform.1} parent=1 // pred_check
      _
    $region19: #{bspline_transform.1} parent=1 // pred_check_branch
      %105 = sbr.rel (0) target = $region21
    $region20: #{bspline_transform.1} parent=1 // pred_region
      _
    $region21: #{bspline_transform.1} parent=1 // pred_fallthru
      _
    %106 = vsyncpa [#allocation3], 1

</llo_original>
